<compile_context>
chip_gen: v6e
topology: v6e:2x2x1
jax: 0.10.0
libtpu: 0.0.40
codegen_flags: <defaults>
</compile_context>

<pallas_src>
import math

import jax
import jax.numpy as jnp
from jax import lax
from jax.experimental import pallas as pl
from jax.experimental.pallas import tpu as pltpu


# ----------------------------- kernel 1: qkv projection -----------------------------

def qkv_proj_kernel(x_ref, wq_ref, wk_ref, wv_ref, bq_ref, bk_ref, bv_ref,
                    q_ref, k_ref, v_ref):
    """One (batch, row-tile, head) step: q/k/v = x @ W + b, written head-major (bf16)."""
    x = x_ref[0].astype(jnp.bfloat16)                  # (TM, C)

    def proj(w_ref, b_ref):
        acc = jnp.dot(x, w_ref[0], preferred_element_type=jnp.float32)   # (TM, hd) f32
        return (acc + b_ref[0]).astype(jnp.bfloat16)

    q_ref[0, 0] = proj(wq_ref, bq_ref)
    k_ref[0, 0] = proj(wk_ref, bk_ref)
    v_ref[0, 0] = proj(wv_ref, bv_ref)


# --------------------- kernel 2: flash attention + fused c_proj ---------------------

def flash_attn_proj_kernel(q_ref, k_ref, v_ref, wp_ref, bp_ref, o_ref,
                           m_scr, l_scr, acc_scr, out_scr):
    """grid = (B, n_q, n_head, n_k); online softmax over key tiles, fused c_proj."""
    i = pl.program_id(1)          # query tile
    h = pl.program_id(2)          # head
    j = pl.program_id(3)          # key tile
    n_head = pl.num_programs(2)
    n_k = pl.num_programs(3)

    block_q = q_ref.shape[2]
    block_k = k_ref.shape[2]
    head_dim = q_ref.shape[3]
    sm_scale = 1.0 / math.sqrt(head_dim)

    # per-(q-tile, head) softmax state
    @pl.when(j == 0)
    def _init_head_state():
        m_scr[...] = jnp.full(m_scr.shape, -jnp.inf, m_scr.dtype)
        l_scr[...] = jnp.zeros(l_scr.shape, l_scr.dtype)
        acc_scr[...] = jnp.zeros(acc_scr.shape, acc_scr.dtype)

    # per-q-tile output accumulator (summed over heads)
    @pl.when(jnp.logical_and(h == 0, j == 0))
    def _init_out():
        out_scr[...] = jnp.zeros(out_scr.shape, out_scr.dtype)

    # skip key tiles that are entirely in the (causal) future of this query tile
    @pl.when(j * block_k < (i + 1) * block_q)
    def _compute():
        q = q_ref[0, 0]                                # (TQ, hd) bf16
        k = k_ref[0, 0]                                # (TK, hd) bf16
        v = v_ref[0, 0]                                # (TK, hd) bf16

        s = lax.dot_general(q, k, (((1,), (1,)), ((), ())),
                            preferred_element_type=jnp.float32) * sm_scale  # (TQ, TK)

        row = i * block_q + lax.broadcasted_iota(jnp.int32, s.shape, 0)
        col = j * block_k + lax.broadcasted_iota(jnp.int32, s.shape, 1)
        s = jnp.where(col <= row, s, -1e30)

        m_prev = m_scr[...]                                             # (TQ, 1)
        m_new = jnp.maximum(m_prev, jnp.max(s, axis=-1, keepdims=True))
        alpha = jnp.exp(m_prev - m_new)
        p = jnp.exp(s - m_new)                                          # (TQ, TK) f32
        l_scr[...] = alpha * l_scr[...] + jnp.sum(p, axis=-1, keepdims=True)
        acc_scr[...] = alpha * acc_scr[...] + jnp.dot(
            p.astype(jnp.bfloat16), v, preferred_element_type=jnp.float32)
        m_scr[...] = m_new

    # after the last key tile: finish this head and fold its slice of c_proj in
    @pl.when(j == n_k - 1)
    def _project_head():
        y_h = acc_scr[...] * pl.reciprocal(l_scr[...], approx=True)     # (TQ, hd) f32
        out_scr[...] += jnp.dot(y_h.astype(jnp.bfloat16), wp_ref[0],
                                preferred_element_type=jnp.float32)     # (TQ, C)

    # after the last head: add bias, store the lane-dense output tile once
    @pl.when(jnp.logical_and(h == n_head - 1, j == n_k - 1))
    def _finalize():
        o_ref[0] = (out_scr[...] + bp_ref[...]).astype(o_ref.dtype)


# ----------------------------------- wrapper ----------------------------------------

def causal_self_attention(x, w_attn, b_attn, w_proj, b_proj, n_head,
                          *, block_m=128, block_q=128, block_k=128):
    """y = c_proj(causal_sdpa(split_heads(c_attn(x)))); weights stored [in, out]."""
    B, T, C = x.shape
    assert C % n_head == 0
    head_dim = C // n_head
    block_m = min(block_m, T)
    block_q = min(block_q, T)
    block_k = min(block_k, T)
    assert T % block_m == 0 and T % block_q == 0 and T % block_k == 0
    assert block_m % 8 == 0 and block_q % 8 == 0 and block_k % 8 == 0

    f32, bf16 = jnp.float32, jnp.bfloat16
    x = x.astype(f32)

    # ---- host-side (one-time) weight relayout: per-head, matmul-ready, bf16 ----
    wq = w_attn[:, 0 * C:1 * C].reshape(C, n_head, head_dim).transpose(1, 0, 2).astype(bf16)
    wk = w_attn[:, 1 * C:2 * C].reshape(C, n_head, head_dim).transpose(1, 0, 2).astype(bf16)
    wv = w_attn[:, 2 * C:3 * C].reshape(C, n_head, head_dim).transpose(1, 0, 2).astype(bf16)
    bq = b_attn[0 * C:1 * C].reshape(n_head, 1, head_dim).astype(f32)
    bk = b_attn[1 * C:2 * C].reshape(n_head, 1, head_dim).astype(f32)
    bv = b_attn[2 * C:3 * C].reshape(n_head, 1, head_dim).astype(f32)
    wp = w_proj.reshape(n_head, head_dim, C).astype(bf16)   # per-head rows of c_proj
    bp = b_proj.reshape(1, C).astype(f32)

    vmem_limit = 64 * 1024 * 1024

    # ---- kernel 1: qkv projection into head-major bf16 [B, H, T, hd] ----
    n_m = T // block_m
    qkv_struct = jax.ShapeDtypeStruct((B, n_head, T, head_dim), bf16)
    head_w_spec = pl.BlockSpec((1, C, head_dim), lambda b, m, h: (h, 0, 0))
    head_b_spec = pl.BlockSpec((1, 1, head_dim), lambda b, m, h: (h, 0, 0))
    q, k, v = pl.pallas_call(
        qkv_proj_kernel,
        grid=(B, n_m, n_head),
        in_specs=[
            pl.BlockSpec((1, block_m, C), lambda b, m, h: (b, m, 0)),
            head_w_spec, head_w_spec, head_w_spec,
            head_b_spec, head_b_spec, head_b_spec,
        ],
        out_specs=[pl.BlockSpec((1, 1, block_m, head_dim),
                                lambda b, m, h: (b, h, m, 0))] * 3,
        out_shape=[qkv_struct] * 3,
        compiler_params=pltpu.CompilerParams(
            dimension_semantics=("parallel", "parallel", "parallel"),
            vmem_limit_bytes=vmem_limit),
    )(x, wq, wk, wv, bq, bk, bv)

    # ---- kernel 2: flash attention (q tiles x streamed k tiles) + fused c_proj ----
    n_q = T // block_q
    n_k = T // block_k
    out = pl.pallas_call(
        flash_attn_proj_kernel,
        grid=(B, n_q, n_head, n_k),
        in_specs=[
            pl.BlockSpec((1, 1, block_q, head_dim), lambda b, i, h, j: (b, h, i, 0)),
            pl.BlockSpec((1, 1, block_k, head_dim), lambda b, i, h, j: (b, h, j, 0)),
            pl.BlockSpec((1, 1, block_k, head_dim), lambda b, i, h, j: (b, h, j, 0)),
            pl.BlockSpec((1, head_dim, C), lambda b, i, h, j: (h, 0, 0)),
            pl.BlockSpec((1, C), lambda b, i, h, j: (0, 0)),
        ],
        out_specs=pl.BlockSpec((1, block_q, C), lambda b, i, h, j: (b, i, 0)),
        out_shape=jax.ShapeDtypeStruct((B, T, C), f32),
        scratch_shapes=[
            pltpu.VMEM((block_q, 1), f32),           # running max  m
            pltpu.VMEM((block_q, 1), f32),           # running denom l
            pltpu.VMEM((block_q, head_dim), f32),    # per-head attention accumulator
            pltpu.VMEM((block_q, C), f32),           # output (c_proj) accumulator
        ],
        compiler_params=pltpu.CompilerParams(
            dimension_semantics=("parallel", "parallel", "arbitrary", "arbitrary"),
            vmem_limit_bytes=vmem_limit),
    )(q, k, v, wp, bp)
    return out


# ------------------------- pure-JAX reference (correctness) -------------------------

def ref_causal_self_attention(x, w_attn, b_attn, w_proj, b_proj, n_head):
    B, T, C = x.shape
    hd = C // n_head
    qkv = x @ w_attn + b_attn
    q, k, v = jnp.split(qkv, 3, axis=-1)
    q = q.reshape(B, T, n_head, hd).transpose(0, 2, 1, 3)
    k = k.reshape(B, T, n_head, hd).transpose(0, 2, 1, 3)
    v = v.reshape(B, T, n_head, hd).transpose(0, 2, 1, 3)
    att = (q @ jnp.swapaxes(k, -1, -2)) / math.sqrt(hd)
    mask = jnp.tril(jnp.ones((T, T), dtype=bool))
    att = jnp.where(mask[None, None], att, -jnp.inf)
    att = jax.nn.softmax(att, axis=-1)
    y = (att @ v).transpose(0, 2, 1, 3).reshape(B, T, C)
    return y @ w_proj + b_proj


# ------------------------------------- main ------------------------------------------

if __name__ == "__main__":
    # small shapes consistent with the module (GPT config scaled down)
    B, T = 2, 128
    n_head, n_embd = 4, 64
    C = n_embd

    key = jax.random.PRNGKey(0)
    kx, kw1, kb1, kw2, kb2 = jax.random.split(key, 5)
    x = jax.random.normal(kx, (B, T, C), dtype=jnp.float32)
    w_attn = jax.random.normal(kw1, (C, 3 * C), jnp.float32) / math.sqrt(C)
    b_attn = 0.1 * jax.random.normal(kb1, (3 * C,), jnp.float32)
    w_proj = jax.random.normal(kw2, (C, C), jnp.float32) / math.sqrt(C)
    b_proj = 0.1 * jax.random.normal(kb2, (C,), jnp.float32)

    y = causal_self_attention(x, w_attn, b_attn, w_proj, b_proj, n_head,
                              block_m=64, block_q=64, block_k=64)
    y = jax.block_until_ready(y)
    assert y.shape == (B, T, C)
    assert not bool(jnp.any(jnp.isnan(y)))

    y_ref = ref_causal_self_attention(x, w_attn, b_attn, w_proj, b_proj, n_head)
    max_err = float(jnp.max(jnp.abs(y - y_ref)))
    assert bool(jnp.allclose(y, y_ref, rtol=3e-2, atol=3e-2)), (
        f"kernel vs reference mismatch (max abs err = {max_err:.4e})")
    print("KERNEL_OK")
</pallas_src>

<mosaic_0001>
module attributes {stable_mosaic.version = 11 : i64} {
  func.func @qkv_proj_kernel(%arg0: i32, %arg1: i32, %arg2: i32, %arg3: memref<1x64x64xf32, #tpu.memory_space<vmem>>, %arg4: memref<1x64x16xbf16, #tpu.memory_space<vmem>>, %arg5: memref<1x64x16xbf16, #tpu.memory_space<vmem>>, %arg6: memref<1x64x16xbf16, #tpu.memory_space<vmem>>, %arg7: memref<1x1x16xf32, #tpu.memory_space<vmem>>, %arg8: memref<1x1x16xf32, #tpu.memory_space<vmem>>, %arg9: memref<1x1x16xf32, #tpu.memory_space<vmem>>, %arg10: memref<1x1x64x16xbf16, #tpu.memory_space<vmem>>, %arg11: memref<1x1x64x16xbf16, #tpu.memory_space<vmem>>, %arg12: memref<1x1x64x16xbf16, #tpu.memory_space<vmem>>) attributes {dimension_semantics = [#tpu.dimension_semantics<parallel>, #tpu.dimension_semantics<parallel>, #tpu.dimension_semantics<parallel>], iteration_bounds = array<i64: 2, 2, 4>, scalar_prefetch = 0 : i64, scratch_operands = 0 : i64, tpu.core_type = #tpu.core_type<tc>, window_params = [{transform_indices = @transform_0, window_bounds = array<i64: 1, 64, 64>}, {transform_indices = @transform_1, window_bounds = array<i64: 1, 64, 16>}, {transform_indices = @transform_2, window_bounds = array<i64: 1, 64, 16>}, {transform_indices = @transform_3, window_bounds = array<i64: 1, 64, 16>}, {transform_indices = @transform_4, window_bounds = array<i64: 1, 1, 16>}, {transform_indices = @transform_5, window_bounds = array<i64: 1, 1, 16>}, {transform_indices = @transform_6, window_bounds = array<i64: 1, 1, 16>}, {transform_indices = @transform_7, window_bounds = array<i64: 1, 1, 64, 16>}, {transform_indices = @transform_8, window_bounds = array<i64: 1, 1, 64, 16>}, {transform_indices = @transform_9, window_bounds = array<i64: 1, 1, 64, 16>}]} {
    %c0 = arith.constant 0 : index
    %c0_0 = arith.constant 0 : index
    %c0_1 = arith.constant 0 : index
    %0 = vector.load %arg3[%c0, %c0_0, %c0_1] : memref<1x64x64xf32, #tpu.memory_space<vmem>>, vector<1x64x64xf32>
    %1 = vector.shape_cast %0 : vector<1x64x64xf32> to vector<64x64xf32>
    %2 = arith.truncf %1 : vector<64x64xf32> to vector<64x64xbf16>
    %c0_2 = arith.constant 0 : index
    %c0_3 = arith.constant 0 : index
    %c0_4 = arith.constant 0 : index
    %3 = vector.load %arg4[%c0_2, %c0_3, %c0_4] : memref<1x64x16xbf16, #tpu.memory_space<vmem>>, vector<1x64x16xbf16>
    %4 = vector.shape_cast %3 : vector<1x64x16xbf16> to vector<64x16xbf16>
    %cst = arith.constant dense<0.000000e+00> : vector<64x16xf32>
    %5 = tpu.matmul %2, %4, %cst {dimension_numbers = #tpu.dot_dimension_numbers<[1], [0], [0], [1], [0, 0, 1, 1], [], []>} : vector<64x64xbf16>, vector<64x16xbf16>, vector<64x16xf32> -> vector<64x16xf32>
    %c0_5 = arith.constant 0 : index
    %c0_6 = arith.constant 0 : index
    %c0_7 = arith.constant 0 : index
    %6 = vector.load %arg7[%c0_5, %c0_6, %c0_7] : memref<1x1x16xf32, #tpu.memory_space<vmem>>, vector<1x1x16xf32>
    %7 = vector.shape_cast %6 : vector<1x1x16xf32> to vector<1x16xf32>
    %8 = vector.broadcast %7 : vector<1x16xf32> to vector<64x16xf32>
    %9 = arith.addf %5, %8 : vector<64x16xf32>
    %10 = arith.truncf %9 : vector<64x16xf32> to vector<64x16xbf16>
    %c0_8 = arith.constant 0 : index
    %c0_9 = arith.constant 0 : index
    %c0_10 = arith.constant 0 : index
    %c0_11 = arith.constant 0 : index
    %11 = vector.load %arg10[%c0_8, %c0_9, %c0_10, %c0_11] : memref<1x1x64x16xbf16, #tpu.memory_space<vmem>>, vector<1x1x64x16xbf16>
    %12 = vector.shape_cast %11 : vector<1x1x64x16xbf16> to vector<64x16xbf16>
    %13 = vector.shape_cast %10 : vector<64x16xbf16> to vector<1x1x64x16xbf16>
    tpu.vector_store %arg10[%c0_8, %c0_9, %c0_10, %c0_11], %13 {strides = array<i32>} : memref<1x1x64x16xbf16, #tpu.memory_space<vmem>>, vector<1x1x64x16xbf16>,
    %c0_12 = arith.constant 0 : index
    %c0_13 = arith.constant 0 : index
    %c0_14 = arith.constant 0 : index
    %14 = vector.load %arg5[%c0_12, %c0_13, %c0_14] : memref<1x64x16xbf16, #tpu.memory_space<vmem>>, vector<1x64x16xbf16>
    %15 = vector.shape_cast %14 : vector<1x64x16xbf16> to vector<64x16xbf16>
    %cst_15 = arith.constant dense<0.000000e+00> : vector<64x16xf32>
    %16 = tpu.matmul %2, %15, %cst_15 {dimension_numbers = #tpu.dot_dimension_numbers<[1], [0], [0], [1], [0, 0, 1, 1], [], []>} : vector<64x64xbf16>, vector<64x16xbf16>, vector<64x16xf32> -> vector<64x16xf32>
    %c0_16 = arith.constant 0 : index
    %c0_17 = arith.constant 0 : index
    %c0_18 = arith.constant 0 : index
    %17 = vector.load %arg8[%c0_16, %c0_17, %c0_18] : memref<1x1x16xf32, #tpu.memory_space<vmem>>, vector<1x1x16xf32>
    %18 = vector.shape_cast %17 : vector<1x1x16xf32> to vector<1x16xf32>
    %19 = vector.broadcast %18 : vector<1x16xf32> to vector<64x16xf32>
    %20 = arith.addf %16, %19 : vector<64x16xf32>
    %21 = arith.truncf %20 : vector<64x16xf32> to vector<64x16xbf16>
    %c0_19 = arith.constant 0 : index
    %c0_20 = arith.constant 0 : index
    %c0_21 = arith.constant 0 : index
    %c0_22 = arith.constant 0 : index
    %22 = vector.load %arg11[%c0_19, %c0_20, %c0_21, %c0_22] : memref<1x1x64x16xbf16, #tpu.memory_space<vmem>>, vector<1x1x64x16xbf16>
    %23 = vector.shape_cast %22 : vector<1x1x64x16xbf16> to vector<64x16xbf16>
    %24 = vector.shape_cast %21 : vector<64x16xbf16> to vector<1x1x64x16xbf16>
    tpu.vector_store %arg11[%c0_19, %c0_20, %c0_21, %c0_22], %24 {strides = array<i32>} : memref<1x1x64x16xbf16, #tpu.memory_space<vmem>>, vector<1x1x64x16xbf16>,
    %c0_23 = arith.constant 0 : index
    %c0_24 = arith.constant 0 : index
    %c0_25 = arith.constant 0 : index
    %25 = vector.load %arg6[%c0_23, %c0_24, %c0_25] : memref<1x64x16xbf16, #tpu.memory_space<vmem>>, vector<1x64x16xbf16>
    %26 = vector.shape_cast %25 : vector<1x64x16xbf16> to vector<64x16xbf16>
    %cst_26 = arith.constant dense<0.000000e+00> : vector<64x16xf32>
    %27 = tpu.matmul %2, %26, %cst_26 {dimension_numbers = #tpu.dot_dimension_numbers<[1], [0], [0], [1], [0, 0, 1, 1], [], []>} : vector<64x64xbf16>, vector<64x16xbf16>, vector<64x16xf32> -> vector<64x16xf32>
    %c0_27 = arith.constant 0 : index
    %c0_28 = arith.constant 0 : index
    %c0_29 = arith.constant 0 : index
    %28 = vector.load %arg9[%c0_27, %c0_28, %c0_29] : memref<1x1x16xf32, #tpu.memory_space<vmem>>, vector<1x1x16xf32>
    %29 = vector.shape_cast %28 : vector<1x1x16xf32> to vector<1x16xf32>
    %30 = vector.broadcast %29 : vector<1x16xf32> to vector<64x16xf32>
    %31 = arith.addf %27, %30 : vector<64x16xf32>
    %32 = arith.truncf %31 : vector<64x16xf32> to vector<64x16xbf16>
    %c0_30 = arith.constant 0 : index
    %c0_31 = arith.constant 0 : index
    %c0_32 = arith.constant 0 : index
    %c0_33 = arith.constant 0 : index
    %33 = vector.load %arg12[%c0_30, %c0_31, %c0_32, %c0_33] : memref<1x1x64x16xbf16, #tpu.memory_space<vmem>>, vector<1x1x64x16xbf16>
    %34 = vector.shape_cast %33 : vector<1x1x64x16xbf16> to vector<64x16xbf16>
    %35 = vector.shape_cast %32 : vector<64x16xbf16> to vector<1x1x64x16xbf16>
    tpu.vector_store %arg12[%c0_30, %c0_31, %c0_32, %c0_33], %35 {strides = array<i32>} : memref<1x1x64x16xbf16, #tpu.memory_space<vmem>>, vector<1x1x64x16xbf16>,
    return
  }
  func.func @transform_0(%arg0: i32, %arg1: i32, %arg2: i32) -> (i32, i32, i32) {
    %c0_i32 = arith.constant 0 : i32
    %c0_i32_0 = arith.constant 0 : i32
    return %arg0, %arg1, %c0_i32 : i32, i32, i32
  }
  func.func @transform_1(%arg0: i32, %arg1: i32, %arg2: i32) -> (i32, i32, i32) {
    %c0_i32 = arith.constant 0 : i32
    %c0_i32_0 = arith.constant 0 : i32
    %c0_i32_1 = arith.constant 0 : i32
    return %arg2, %c0_i32, %c0_i32_0 : i32, i32, i32
  }
  func.func @transform_2(%arg0: i32, %arg1: i32, %arg2: i32) -> (i32, i32, i32) {
    %c0_i32 = arith.constant 0 : i32
    %c0_i32_0 = arith.constant 0 : i32
    %c0_i32_1 = arith.constant 0 : i32
    return %arg2, %c0_i32, %c0_i32_0 : i32, i32, i32
  }
  func.func @transform_3(%arg0: i32, %arg1: i32, %arg2: i32) -> (i32, i32, i32) {
    %c0_i32 = arith.constant 0 : i32
    %c0_i32_0 = arith.constant 0 : i32
    %c0_i32_1 = arith.constant 0 : i32
    return %arg2, %c0_i32, %c0_i32_0 : i32, i32, i32
  }
  func.func @transform_4(%arg0: i32, %arg1: i32, %arg2: i32) -> (i32, i32, i32) {
    %c0_i32 = arith.constant 0 : i32
    %c0_i32_0 = arith.constant 0 : i32
    %c0_i32_1 = arith.constant 0 : i32
    return %arg2, %c0_i32, %c0_i32_0 : i32, i32, i32
  }
  func.func @transform_5(%arg0: i32, %arg1: i32, %arg2: i32) -> (i32, i32, i32) {
    %c0_i32 = arith.constant 0 : i32
    %c0_i32_0 = arith.constant 0 : i32
    %c0_i32_1 = arith.constant 0 : i32
    return %arg2, %c0_i32, %c0_i32_0 : i32, i32, i32
  }
  func.func @transform_6(%arg0: i32, %arg1: i32, %arg2: i32) -> (i32, i32, i32) {
    %c0_i32 = arith.constant 0 : i32
    %c0_i32_0 = arith.constant 0 : i32
    %c0_i32_1 = arith.constant 0 : i32
    return %arg2, %c0_i32, %c0_i32_0 : i32, i32, i32
  }
  func.func @transform_7(%arg0: i32, %arg1: i32, %arg2: i32) -> (i32, i32, i32, i32) {
    %c0_i32 = arith.constant 0 : i32
    %c0_i32_0 = arith.constant 0 : i32
    return %arg0, %arg2, %arg1, %c0_i32 : i32, i32, i32, i32
  }
  func.func @transform_8(%arg0: i32, %arg1: i32, %arg2: i32) -> (i32, i32, i32, i32) {
    %c0_i32 = arith.constant 0 : i32
    %c0_i32_0 = arith.constant 0 : i32
    return %arg0, %arg2, %arg1, %c0_i32 : i32, i32, i32, i32
  }
  func.func @transform_9(%arg0: i32, %arg1: i32, %arg2: i32) -> (i32, i32, i32, i32) {
    %c0_i32 = arith.constant 0 : i32
    %c0_i32_0 = arith.constant 0 : i32
    return %arg0, %arg2, %arg1, %c0_i32 : i32, i32, i32, i32
  }
}

</mosaic_0001>

<llo_original>
// kernel: tpu_custom_call.1
$region0: #{tpu_custom_call.1}
  #allocation0 [shape = 'u32[]', space=smem, size = 0x4, offset = 0x4, fixed_abs, tag = 'smem constant byte address 0x4 - core index']
  #allocation1 [shape = 'u32[144,128]{1,0:T(1,128)}', space=vmem, size = 0x12000, scoped, tag = 'internal scratch']
  %s0 = inlined_call_operand.vmem [shape: f32[2,128,64], index: 0, kind: input, shape index: {}]
  %s1 = inlined_call_operand.vmem [shape: bf16[4,64,16], index: 1, kind: input, shape index: {}]
  %s2 = inlined_call_operand.vmem [shape: bf16[4,64,16], index: 2, kind: input, shape index: {}]
  %s3 = inlined_call_operand.vmem [shape: bf16[4,64,16], index: 3, kind: input, shape index: {}]
  %s4 = inlined_call_operand.vmem [shape: f32[4,1,16], index: 4, kind: input, shape index: {}]
  %s5 = inlined_call_operand.vmem [shape: f32[4,1,16], index: 5, kind: input, shape index: {}]
  %s6 = inlined_call_operand.vmem [shape: f32[4,1,16], index: 6, kind: input, shape index: {}]
  %s7 = inlined_call_operand.vmem [shape: bf16[2,4,128,16], index: 7, kind: output, shape index: {0}]
  %s8 = inlined_call_operand.vmem [shape: bf16[2,4,128,16], index: 8, kind: output, shape index: {1}]
  %s9 = inlined_call_operand.vmem [shape: bf16[2,4,128,16], index: 9, kind: output, shape index: {2}]
  %10 = xla_tuple %s7, %s8, %s9
  %s11 = sld [smem:[#allocation0]]
  $region77: #{tpu_custom_call.1} parent=0
    _
  %s13 = ssub.s32 1, %s11
  %s14 = scalar_select 0, %s13, %s11
  loop: start=0, step=1, limit=18
  $region2: #{tpu_custom_call.1} parent=0 // loop_pre_header
    _
  $region3: #{tpu_custom_call.1} parent=0 // loop_header
    %s16 = sphi 0, %s20
    %p17 = scmp.ge.s32.totalorder %s16, 18
    %s23 = sphi 0, %s42
    %s24 = sphi 0, %s38
    %s25 = sphi 0, %s34
    %s26 = sphi 0, %s23
    %s27 = sphi 0, %s24
    %s28 = sphi 0, %s25
    %s29 = sphi 0, %s26
    %s30 = sphi 0, %s27
    %s31 = sphi 0, %s28
    %s47 = sphi 0, %s49
    %s50 = sphi 0, %s47
    %s51 = sphi 0, %s50
    %s67 = sphi 0, %s51
    %s73 = sphi 0, %s75
    %s76 = sphi 0, %s73
    %s77 = sphi 0, %s76
    %s93 = sphi 0, %s77
    %s99 = sphi 0, %s101
    %s102 = sphi 0, %s99
    %s103 = sphi 0, %s102
    %s119 = sphi 0, %s103
    %s125 = sphi 0, %s127
    %s128 = sphi 0, %s125
    %s129 = sphi 0, %s128
    %s145 = sphi 0, %s129
    %s151 = sphi 0, %s153
    %s154 = sphi 0, %s151
    %s155 = sphi 0, %s154
    %s171 = sphi 0, %s155
    %s177 = sphi 0, %s179
    %s180 = sphi 0, %s177
    %s181 = sphi 0, %s180
    %s197 = sphi 0, %s181
    %s203 = sphi 0, %s205
    %s206 = sphi 0, %s203
    %s207 = sphi 0, %s206
    %s223 = sphi 0, %s207
    %s233 = sphi 0, %s235
    %s236 = sphi 0, %s233
    %s237 = sphi 0, %s236
    %s253 = sphi 0, %s237
    %s263 = sphi 0, %s265
    %s266 = sphi 0, %s263
    %s267 = sphi 0, %s266
    %s283 = sphi 0, %s267
    %s293 = sphi 0, %s295
    %s296 = sphi 0, %s293
    %s297 = sphi 0, %s296
    %s313 = sphi 0, %s297
  $region4: #{tpu_custom_call.1} parent=0 // loop_header_branch
    %19 = sbr.rel (%p17) target = $region8
  $region5: #{tpu_custom_call.1} parent=0 // loop_body
    %s21 = ssub.s32 %s16, 1
    %s22 = ssub.s32 %s16, 2
    %s32 = sadd.s32 1, %s25
    %p33 = scmp.ge.s32.totalorder %s32, 4
    %s34 = scalar_select %p33, 0, %s32
    %s35 = sadd.s32 1, %s24
    %s36 = scalar_select %p33, %s35, %s24
    %p37 = scmp.ge.s32.totalorder %s36, 2
    %s38 = scalar_select %p37, 0, %s36
    %s39 = sadd.s32 1, %s23
    %s40 = scalar_select %p37, %s39, %s23
    %p41 = scmp.ge.s32.totalorder %s40, 2
    %s42 = scalar_select %p41, 0, %s40
    %s43 = ssub.s32 %s23, %s42
    %s44 = ssub.s32 %s24, %s38
    %s45 = sor.u32 %s43, %s44
    %p46 = scmp.eq.s32.totalorder %s45, 0
    %s48 = sadd.s32 %s47, 1
    %s49 = scalar_select %p46, %s47, %s48
    %p52 = pneg %p46
    %p53 = scmp.eq.s32.totalorder %s16, 15
    %p54 = por %p52, %p53
    %p55 = scmp.ne.s32.totalorder %s47, %s50
    %p56 = scmp.eq.s32.totalorder %s16, 0
    %p57 = por %p55, %p56
    %p58 = scmp.ne.s32.totalorder %s47, %s50
    %p59 = scmp.eq.s32.totalorder %s21, 15
    %p60 = por %p58, %p59
    %p61 = scmp.ne.s32.totalorder %s50, %s51
    %p62 = scmp.eq.s32.totalorder %s21, 0
    %p63 = por %p61, %p62
    %p64 = scmp.ne.s32.totalorder %s50, %s51
    %p65 = scmp.eq.s32.totalorder %s22, 15
    %p66 = por %p64, %p65
    %p68 = scmp.ne.s32.totalorder %s51, %s67
    %p69 = scmp.eq.s32.totalorder %s22, 0
    %p70 = por %p68, %p69
    %s71 = ssub.s32 %s25, %s34
    %p72 = scmp.eq.s32.totalorder %s71, 0
    %s74 = sadd.s32 %s73, 1
    %s75 = scalar_select %p72, %s73, %s74
    %p78 = pneg %p72
    %p79 = scmp.eq.s32.totalorder %s16, 15
    %p80 = por %p78, %p79
    %p81 = scmp.ne.s32.totalorder %s73, %s76
    %p82 = scmp.eq.s32.totalorder %s16, 0
    %p83 = por %p81, %p82
    %p84 = scmp.ne.s32.totalorder %s73, %s76
    %p85 = scmp.eq.s32.totalorder %s21, 15
    %p86 = por %p84, %p85
    %p87 = scmp.ne.s32.totalorder %s76, %s77
    %p88 = scmp.eq.s32.totalorder %s21, 0
    %p89 = por %p87, %p88
    %p90 = scmp.ne.s32.totalorder %s76, %s77
    %p91 = scmp.eq.s32.totalorder %s22, 15
    %p92 = por %p90, %p91
    %p94 = scmp.ne.s32.totalorder %s77, %s93
    %p95 = scmp.eq.s32.totalorder %s22, 0
    %p96 = por %p94, %p95
    %s97 = ssub.s32 %s25, %s34
    %p98 = scmp.eq.s32.totalorder %s97, 0
    %s100 = sadd.s32 %s99, 1
    %s101 = scalar_select %p98, %s99, %s100
    %p104 = pneg %p98
    %p105 = scmp.eq.s32.totalorder %s16, 15
    %p106 = por %p104, %p105
    %p107 = scmp.ne.s32.totalorder %s99, %s102
    %p108 = scmp.eq.s32.totalorder %s16, 0
    %p109 = por %p107, %p108
    %p110 = scmp.ne.s32.totalorder %s99, %s102
    %p111 = scmp.eq.s32.totalorder %s21, 15
    %p112 = por %p110, %p111
    %p113 = scmp.ne.s32.totalorder %s102, %s103
    %p114 = scmp.eq.s32.totalorder %s21, 0
    %p115 = por %p113, %p114
    %p116 = scmp.ne.s32.totalorder %s102, %s103
    %p117 = scmp.eq.s32.totalorder %s22, 15
    %p118 = por %p116, %p117
    %p120 = scmp.ne.s32.totalorder %s103, %s119
    %p121 = scmp.eq.s32.totalorder %s22, 0
    %p122 = por %p120, %p121
    %s123 = ssub.s32 %s25, %s34
    %p124 = scmp.eq.s32.totalorder %s123, 0
    %s126 = sadd.s32 %s125, 1
    %s127 = scalar_select %p124, %s125, %s126
    %p130 = pneg %p124
    %p131 = scmp.eq.s32.totalorder %s16, 15
    %p132 = por %p130, %p131
    %p133 = scmp.ne.s32.totalorder %s125, %s128
    %p134 = scmp.eq.s32.totalorder %s16, 0
    %p135 = por %p133, %p134
    %p136 = scmp.ne.s32.totalorder %s125, %s128
    %p137 = scmp.eq.s32.totalorder %s21, 15
    %p138 = por %p136, %p137
    %p139 = scmp.ne.s32.totalorder %s128, %s129
    %p140 = scmp.eq.s32.totalorder %s21, 0
    %p141 = por %p139, %p140
    %p142 = scmp.ne.s32.totalorder %s128, %s129
    %p143 = scmp.eq.s32.totalorder %s22, 15
    %p144 = por %p142, %p143
    %p146 = scmp.ne.s32.totalorder %s129, %s145
    %p147 = scmp.eq.s32.totalorder %s22, 0
    %p148 = por %p146, %p147
    %s149 = ssub.s32 %s25, %s34
    %p150 = scmp.eq.s32.totalorder %s149, 0
    %s152 = sadd.s32 %s151, 1
    %s153 = scalar_select %p150, %s151, %s152
    %p156 = pneg %p150
    %p157 = scmp.eq.s32.totalorder %s16, 15
    %p158 = por %p156, %p157
    %p159 = scmp.ne.s32.totalorder %s151, %s154
    %p160 = scmp.eq.s32.totalorder %s16, 0
    %p161 = por %p159, %p160
    %p162 = scmp.ne.s32.totalorder %s151, %s154
    %p163 = scmp.eq.s32.totalorder %s21, 15
    %p164 = por %p162, %p163
    %p165 = scmp.ne.s32.totalorder %s154, %s155
    %p166 = scmp.eq.s32.totalorder %s21, 0
    %p167 = por %p165, %p166
    %p168 = scmp.ne.s32.totalorder %s154, %s155
    %p169 = scmp.eq.s32.totalorder %s22, 15
    %p170 = por %p168, %p169
    %p172 = scmp.ne.s32.totalorder %s155, %s171
    %p173 = scmp.eq.s32.totalorder %s22, 0
    %p174 = por %p172, %p173
    %s175 = ssub.s32 %s25, %s34
    %p176 = scmp.eq.s32.totalorder %s175, 0
    %s178 = sadd.s32 %s177, 1
    %s179 = scalar_select %p176, %s177, %s178
    %p182 = pneg %p176
    %p183 = scmp.eq.s32.totalorder %s16, 15
    %p184 = por %p182, %p183
    %p185 = scmp.ne.s32.totalorder %s177, %s180
    %p186 = scmp.eq.s32.totalorder %s16, 0
    %p187 = por %p185, %p186
    %p188 = scmp.ne.s32.totalorder %s177, %s180
    %p189 = scmp.eq.s32.totalorder %s21, 15
    %p190 = por %p188, %p189
    %p191 = scmp.ne.s32.totalorder %s180, %s181
    %p192 = scmp.eq.s32.totalorder %s21, 0
    %p193 = por %p191, %p192
    %p194 = scmp.ne.s32.totalorder %s180, %s181
    %p195 = scmp.eq.s32.totalorder %s22, 15
    %p196 = por %p194, %p195
    %p198 = scmp.ne.s32.totalorder %s181, %s197
    %p199 = scmp.eq.s32.totalorder %s22, 0
    %p200 = por %p198, %p199
    %s201 = ssub.s32 %s25, %s34
    %p202 = scmp.eq.s32.totalorder %s201, 0
    %s204 = sadd.s32 %s203, 1
    %s205 = scalar_select %p202, %s203, %s204
    %p208 = pneg %p202
    %p209 = scmp.eq.s32.totalorder %s16, 15
    %p210 = por %p208, %p209
    %p211 = scmp.ne.s32.totalorder %s203, %s206
    %p212 = scmp.eq.s32.totalorder %s16, 0
    %p213 = por %p211, %p212
    %p214 = scmp.ne.s32.totalorder %s203, %s206
    %p215 = scmp.eq.s32.totalorder %s21, 15
    %p216 = por %p214, %p215
    %p217 = scmp.ne.s32.totalorder %s206, %s207
    %p218 = scmp.eq.s32.totalorder %s21, 0
    %p219 = por %p217, %p218
    %p220 = scmp.ne.s32.totalorder %s206, %s207
    %p221 = scmp.eq.s32.totalorder %s22, 15
    %p222 = por %p220, %p221
    %p224 = scmp.ne.s32.totalorder %s207, %s223
    %p225 = scmp.eq.s32.totalorder %s22, 0
    %p226 = por %p224, %p225
    %s227 = ssub.s32 %s23, %s42
    %s228 = ssub.s32 %s25, %s34
    %s229 = sor.u32 %s227, %s228
    %s230 = ssub.s32 %s24, %s38
    %s231 = sor.u32 %s229, %s230
    %p232 = scmp.eq.s32.totalorder %s231, 0
    %s234 = sadd.s32 %s233, 1
    %s235 = scalar_select %p232, %s233, %s234
    %p238 = pneg %p232
    %p239 = scmp.eq.s32.totalorder %s16, 15
    %p240 = por %p238, %p239
    %p241 = scmp.ne.s32.totalorder %s233, %s236
    %p242 = scmp.eq.s32.totalorder %s16, 0
    %p243 = por %p241, %p242
    %p244 = scmp.ne.s32.totalorder %s233, %s236
    %p245 = scmp.eq.s32.totalorder %s21, 15
    %p246 = por %p244, %p245
    %p247 = scmp.ne.s32.totalorder %s236, %s237
    %p248 = scmp.eq.s32.totalorder %s21, 0
    %p249 = por %p247, %p248
    %p250 = scmp.ne.s32.totalorder %s236, %s237
    %p251 = scmp.eq.s32.totalorder %s22, 15
    %p252 = por %p250, %p251
    %p254 = scmp.ne.s32.totalorder %s237, %s253
    %p255 = scmp.eq.s32.totalorder %s22, 0
    %p256 = por %p254, %p255
    %s257 = ssub.s32 %s23, %s42
    %s258 = ssub.s32 %s25, %s34
    %s259 = sor.u32 %s257, %s258
    %s260 = ssub.s32 %s24, %s38
    %s261 = sor.u32 %s259, %s260
    %p262 = scmp.eq.s32.totalorder %s261, 0
    %s264 = sadd.s32 %s263, 1
    %s265 = scalar_select %p262, %s263, %s264
    %p268 = pneg %p262
    %p269 = scmp.eq.s32.totalorder %s16, 15
    %p270 = por %p268, %p269
    %p271 = scmp.ne.s32.totalorder %s263, %s266
    %p272 = scmp.eq.s32.totalorder %s16, 0
    %p273 = por %p271, %p272
    %p274 = scmp.ne.s32.totalorder %s263, %s266
    %p275 = scmp.eq.s32.totalorder %s21, 15
    %p276 = por %p274, %p275
    %p277 = scmp.ne.s32.totalorder %s266, %s267
    %p278 = scmp.eq.s32.totalorder %s21, 0
    %p279 = por %p277, %p278
    %p280 = scmp.ne.s32.totalorder %s266, %s267
    %p281 = scmp.eq.s32.totalorder %s22, 15
    %p282 = por %p280, %p281
    %p284 = scmp.ne.s32.totalorder %s267, %s283
    %p285 = scmp.eq.s32.totalorder %s22, 0
    %p286 = por %p284, %p285
    %s287 = ssub.s32 %s23, %s42
    %s288 = ssub.s32 %s25, %s34
    %s289 = sor.u32 %s287, %s288
    %s290 = ssub.s32 %s24, %s38
    %s291 = sor.u32 %s289, %s290
    %p292 = scmp.eq.s32.totalorder %s291, 0
    %s294 = sadd.s32 %s293, 1
    %s295 = scalar_select %p292, %s293, %s294
    %p298 = pneg %p292
    %p299 = scmp.eq.s32.totalorder %s16, 15
    %p300 = por %p298, %p299
    %p301 = scmp.ne.s32.totalorder %s293, %s296
    %p302 = scmp.eq.s32.totalorder %s16, 0
    %p303 = por %p301, %p302
    %p304 = scmp.ne.s32.totalorder %s293, %s296
    %p305 = scmp.eq.s32.totalorder %s21, 15
    %p306 = por %p304, %p305
    %p307 = scmp.ne.s32.totalorder %s296, %s297
    %p308 = scmp.eq.s32.totalorder %s21, 0
    %p309 = por %p307, %p308
    %p310 = scmp.ne.s32.totalorder %s296, %s297
    %p311 = scmp.eq.s32.totalorder %s22, 15
    %p312 = por %p310, %p311
    %p314 = scmp.ne.s32.totalorder %s297, %s313
    %p315 = scmp.eq.s32.totalorder %s22, 0
    %p316 = por %p314, %p315
    %p317 = scmp.le.s32.totalorder 1, %s16
    %p318 = scmp.lt.s32.totalorder %s16, 17
    %p319 = pnand %p317, %p318
    %p320 = pneg %p319
    // Predicated region
    $region9: #{tpu_custom_call.1} parent=5 // pred_check
      _
    $region10: #{tpu_custom_call.1} parent=5 // pred_check_branch
      %322 = sbr.rel (%p319) target = $region12
    $region11: #{tpu_custom_call.1} parent=5 // pred_region
      %s323 = ssub.s32 %s16, 1
    $region12: #{tpu_custom_call.1} parent=5 // pred_fallthru
      _
    %p324 = scmp.lt.s32.totalorder %s16, 16
    // Predicated region
    $region13: #{tpu_custom_call.1} parent=5 // pred_check
      %p325 = pneg %p324
    $region14: #{tpu_custom_call.1} parent=5 // pred_check_branch
      %327 = sbr.rel (%p325) target = $region16
    $region15: #{tpu_custom_call.1} parent=5 // pred_region
      // Predicated region
      $region17: #{tpu_custom_call.1} parent=15 // pred_check
        %p328 = pneg %p57
      $region18: #{tpu_custom_call.1} parent=15 // pred_check_branch
        %330 = sbr.rel (%p328) target = $region20
      $region19: #{tpu_custom_call.1} parent=15 // pred_region
        %s331 = smul.u32 8, %s24
        %p332 = scmp.lt.s32.totalorder %s23, 1
        %s333 = scalar_select %p332, %s23, 1
        %p334 = scmp.lt.s32.totalorder %s331, 15
        %s335 = scalar_select %p334, %s331, 15
        %s336 = smul.addr %s333, 16
        %s337 = sadd.s32 %s335, %s336
        %s338 = smul.addr %s337, 8
        %s339 = scalar_lea.vmem %s0, %s338
        %s340 = smul.u32 8, %s24
      $region20: #{tpu_custom_call.1} parent=15 // pred_fallthru
        _
      // Predicated region
      $region21: #{tpu_custom_call.1} parent=15 // pred_check
        %p341 = pneg %p83
      $region22: #{tpu_custom_call.1} parent=15 // pred_check_branch
        %343 = sbr.rel (%p341) target = $region24
      $region23: #{tpu_custom_call.1} parent=15 // pred_region
        %p344 = scmp.lt.s32.totalorder %s25, 3
        %s345 = scalar_select %p344, %s25, 3
        %s346 = smul.addr %s345, 8
        %s347 = smul.addr %s346, 4
        %s348 = scalar_lea.vmem %s1, %s347
      $region24: #{tpu_custom_call.1} parent=15 // pred_fallthru
        _
      // Predicated region
      $region25: #{tpu_custom_call.1} parent=15 // pred_check
        %p349 = pneg %p109
      $region26: #{tpu_custom_call.1} parent=15 // pred_check_branch
        %351 = sbr.rel (%p349) target = $region28
      $region27: #{tpu_custom_call.1} parent=15 // pred_region
        %p352 = scmp.lt.s32.totalorder %s25, 3
        %s353 = scalar_select %p352, %s25, 3
        %s354 = smul.addr %s353, 8
        %s355 = smul.addr %s354, 4
        %s356 = scalar_lea.vmem %s2, %s355
      $region28: #{tpu_custom_call.1} parent=15 // pred_fallthru
        _
      // Predicated region
      $region29: #{tpu_custom_call.1} parent=15 // pred_check
        %p357 = pneg %p135
      $region30: #{tpu_custom_call.1} parent=15 // pred_check_branch
        %359 = sbr.rel (%p357) target = $region32
      $region31: #{tpu_custom_call.1} parent=15 // pred_region
        %p360 = scmp.lt.s32.totalorder %s25, 3
        %s361 = scalar_select %p360, %s25, 3
        %s362 = smul.addr %s361, 8
        %s363 = smul.addr %s362, 4
        %s364 = scalar_lea.vmem %s3, %s363
      $region32: #{tpu_custom_call.1} parent=15 // pred_fallthru
        _
      // Predicated region
      $region33: #{tpu_custom_call.1} parent=15 // pred_check
        %p365 = pneg %p161
      $region34: #{tpu_custom_call.1} parent=15 // pred_check_branch
        %367 = sbr.rel (%p365) target = $region36
      $region35: #{tpu_custom_call.1} parent=15 // pred_region
        %p368 = scmp.lt.s32.totalorder %s25, 3
        %s369 = scalar_select %p368, %s25, 3
        %s370 = scalar_lea.vmem %s4, %s369
      $region36: #{tpu_custom_call.1} parent=15 // pred_fallthru
        _
      // Predicated region
      $region37: #{tpu_custom_call.1} parent=15 // pred_check
        %p371 = pneg %p187
      $region38: #{tpu_custom_call.1} parent=15 // pred_check_branch
        %373 = sbr.rel (%p371) target = $region40
      $region39: #{tpu_custom_call.1} parent=15 // pred_region
        %p374 = scmp.lt.s32.totalorder %s25, 3
        %s375 = scalar_select %p374, %s25, 3
        %s376 = scalar_lea.vmem %s5, %s375
      $region40: #{tpu_custom_call.1} parent=15 // pred_fallthru
        _
      // Predicated region
      $region41: #{tpu_custom_call.1} parent=15 // pred_check
        %p377 = pneg %p213
      $region42: #{tpu_custom_call.1} parent=15 // pred_check_branch
        %379 = sbr.rel (%p377) target = $region44
      $region43: #{tpu_custom_call.1} parent=15 // pred_region
        %p380 = scmp.lt.s32.totalorder %s25, 3
        %s381 = scalar_select %p380, %s25, 3
        %s382 = scalar_lea.vmem %s6, %s381
      $region44: #{tpu_custom_call.1} parent=15 // pred_fallthru
        _
    $region16: #{tpu_custom_call.1} parent=5 // pred_fallthru
      _
    %p383 = scmp.le.s32.totalorder 1, %s16
    %p384 = scmp.lt.s32.totalorder %s16, 17
    %p385 = pnand %p383, %p384
    %p386 = pneg %p385
    // Predicated region
    $region45: #{tpu_custom_call.1} parent=5 // pred_check
      _
    $region46: #{tpu_custom_call.1} parent=5 // pred_check_branch
      %388 = sbr.rel (%p385) target = $region48
    $region47: #{tpu_custom_call.1} parent=5 // pred_region
      %s389 = ssub.s32 %s16, 1
      %s390 = smul.u32 8, %s27
      %p391 = scmp.lt.s32.totalorder %s26, 1
      %s392 = scalar_select %p391, %s26, 1
      %p393 = scmp.lt.s32.totalorder %s390, 15
      %s394 = scalar_select %p393, %s390, 15
      %s395 = smul.addr %s392, 16
      %s396 = sadd.s32 %s394, %s395
      %s397 = smul.addr %s396, 8
      %s398 = scalar_lea.vmem %s0, %s397
      %p399 = pneg %p63
      %p400 = pneg %p60
      %p401 = scmp.lt.s32.totalorder %s28, 3
      %s402 = scalar_select %p401, %s28, 3
      %s403 = smul.addr %s402, 8
      %s404 = smul.addr %s403, 4
      %s405 = scalar_lea.vmem %s1, %s404
      %p406 = pneg %p89
      %p407 = pneg %p86
      %p408 = scmp.lt.s32.totalorder %s28, 3
      %s409 = scalar_select %p408, %s28, 3
      %s410 = smul.addr %s409, 8
      %s411 = smul.addr %s410, 4
      %s412 = scalar_lea.vmem %s2, %s411
      %p413 = pneg %p115
      %p414 = pneg %p112
      %p415 = scmp.lt.s32.totalorder %s28, 3
      %s416 = scalar_select %p415, %s28, 3
      %s417 = smul.addr %s416, 8
      %s418 = smul.addr %s417, 4
      %s419 = scalar_lea.vmem %s3, %s418
      %p420 = pneg %p141
      %p421 = pneg %p138
      %p422 = scmp.lt.s32.totalorder %s28, 3
      %s423 = scalar_select %p422, %s28, 3
      %s424 = scalar_lea.vmem %s4, %s423
      %p425 = pneg %p167
      %p426 = pneg %p164
      %p427 = scmp.lt.s32.totalorder %s28, 3
      %s428 = scalar_select %p427, %s28, 3
      %s429 = scalar_lea.vmem %s5, %s428
      %p430 = pneg %p193
      %p431 = pneg %p190
      %p432 = scmp.lt.s32.totalorder %s28, 3
      %s433 = scalar_select %p432, %s28, 3
      %s434 = scalar_lea.vmem %s6, %s433
      %p435 = pneg %p219
      %p436 = pneg %p216
      %p437 = pneg %p249
      %p438 = pneg %p246
      %s439 = smul.u32 8, %s27
      %p440 = scmp.lt.s32.totalorder %s26, 1
      %s441 = scalar_select %p440, %s26, 1
      %p442 = scmp.lt.s32.totalorder %s28, 3
      %s443 = scalar_select %p442, %s28, 3
      %p444 = scmp.lt.s32.totalorder %s439, 15
      %s445 = scalar_select %p444, %s439, 15
      %s446 = smul.addr %s443, 16
      %s447 = sadd.s32 %s445, %s446
      %s448 = smul.addr %s441, 64
      %s449 = sadd.s32 %s447, %s448
      %s450 = smul.addr %s449, 4
      %s451 = scalar_lea.vmem %s7, %s450
      %p452 = pneg %p279
      %p453 = pneg %p276
      %s454 = smul.u32 8, %s27
      %p455 = scmp.lt.s32.totalorder %s26, 1
      %s456 = scalar_select %p455, %s26, 1
      %p457 = scmp.lt.s32.totalorder %s28, 3
      %s458 = scalar_select %p457, %s28, 3
      %p459 = scmp.lt.s32.totalorder %s454, 15
      %s460 = scalar_select %p459, %s454, 15
      %s461 = smul.addr %s458, 16
      %s462 = sadd.s32 %s460, %s461
      %s463 = smul.addr %s456, 64
      %s464 = sadd.s32 %s462, %s463
      %s465 = smul.addr %s464, 4
      %s466 = scalar_lea.vmem %s8, %s465
      %p467 = pneg %p309
      %p468 = pneg %p306
      %s469 = smul.u32 8, %s27
      %p470 = scmp.lt.s32.totalorder %s26, 1
      %s471 = scalar_select %p470, %s26, 1
      %p472 = scmp.lt.s32.totalorder %s28, 3
      %s473 = scalar_select %p472, %s28, 3
      %p474 = scmp.lt.s32.totalorder %s469, 15
      %s475 = scalar_select %p474, %s469, 15
      %s476 = smul.addr %s473, 16
      %s477 = sadd.s32 %s475, %s476
      %s478 = smul.addr %s471, 64
      %s479 = sadd.s32 %s477, %s478
      %s480 = smul.addr %s479, 4
      %s481 = scalar_lea.vmem %s9, %s480
      %s482 = smul.u32 8, %s27
      %p483 = scmp.lt.s32.totalorder %s26, 1
      %s484 = scalar_select %p483, %s26, 1
      %p485 = scmp.lt.s32.totalorder %s482, 15
      %s486 = scalar_select %p485, %s482, 15
      %s487 = smul.addr %s484, 16
      %s488 = sadd.s32 %s486, %s487
      %s489 = smul.addr %s488, 8
      %s490 = scalar_lea.vmem %s0, %s489
      %s491 = smul.u32 8, %s27
      %p492 = scmp.lt.s32.totalorder %s28, 3
      %s493 = scalar_select %p492, %s28, 3
      %s494 = smul.addr %s493, 8
      %s495 = smul.addr %s494, 4
      %s496 = scalar_lea.vmem %s1, %s495
      %p497 = scmp.lt.s32.totalorder %s28, 3
      %s498 = scalar_select %p497, %s28, 3
      %s499 = smul.addr %s498, 8
      %s500 = smul.addr %s499, 4
      %s501 = scalar_lea.vmem %s2, %s500
      %p502 = scmp.lt.s32.totalorder %s28, 3
      %s503 = scalar_select %p502, %s28, 3
      %s504 = smul.addr %s503, 8
      %s505 = smul.addr %s504, 4
      %s506 = scalar_lea.vmem %s3, %s505
      %p507 = scmp.lt.s32.totalorder %s28, 3
      %s508 = scalar_select %p507, %s28, 3
      %s509 = scalar_lea.vmem %s4, %s508
      %p510 = scmp.lt.s32.totalorder %s28, 3
      %s511 = scalar_select %p510, %s28, 3
      %s512 = scalar_lea.vmem %s5, %s511
      %p513 = scmp.lt.s32.totalorder %s28, 3
      %s514 = scalar_select %p513, %s28, 3
      %s515 = scalar_lea.vmem %s6, %s514
      %s516 = smul.u32 8, %s27
      %p517 = scmp.lt.s32.totalorder %s26, 1
      %s518 = scalar_select %p517, %s26, 1
      %p519 = scmp.lt.s32.totalorder %s28, 3
      %s520 = scalar_select %p519, %s28, 3
      %p521 = scmp.lt.s32.totalorder %s516, 15
      %s522 = scalar_select %p521, %s516, 15
      %s523 = smul.addr %s520, 16
      %s524 = sadd.s32 %s522, %s523
      %s525 = smul.addr %s518, 64
      %s526 = sadd.s32 %s524, %s525
      %s527 = smul.addr %s526, 4
      %s528 = scalar_lea.vmem %s7, %s527
      %s529 = smul.u32 8, %s27
      %s530 = smul.u32 8, %s27
      %p531 = scmp.lt.s32.totalorder %s26, 1
      %s532 = scalar_select %p531, %s26, 1
      %p533 = scmp.lt.s32.totalorder %s28, 3
      %s534 = scalar_select %p533, %s28, 3
      %p535 = scmp.lt.s32.totalorder %s530, 15
      %s536 = scalar_select %p535, %s530, 15
      %s537 = smul.addr %s534, 16
      %s538 = sadd.s32 %s536, %s537
      %s539 = smul.addr %s532, 64
      %s540 = sadd.s32 %s538, %s539
      %s541 = smul.addr %s540, 4
      %s542 = scalar_lea.vmem %s8, %s541
      %s543 = smul.u32 8, %s27
      %s544 = smul.u32 8, %s27
      %p545 = scmp.lt.s32.totalorder %s26, 1
      %s546 = scalar_select %p545, %s26, 1
      %p547 = scmp.lt.s32.totalorder %s28, 3
      %s548 = scalar_select %p547, %s28, 3
      %p549 = scmp.lt.s32.totalorder %s544, 15
      %s550 = scalar_select %p549, %s544, 15
      %s551 = smul.addr %s548, 16
      %s552 = sadd.s32 %s550, %s551
      %s553 = smul.addr %s546, 64
      %s554 = sadd.s32 %s552, %s553
      %s555 = smul.addr %s554, 4
      %s556 = scalar_lea.vmem %s9, %s555
      %s557 = smul.u32 8, %s27
      %v559 = vld [vmem:[%s490] sm:$0xff]
      %v560 = vld [vmem:[%s490 + $0x8] sm:$0xff]
      %v561 = vld [vmem:[%s490 + $0x10] sm:$0xff]
      %v562 = vld [vmem:[%s490 + $0x18] sm:$0xff]
      %v563 = vld [vmem:[%s490 + $0x20] sm:$0xff]
      %v564 = vld [vmem:[%s490 + $0x28] sm:$0xff]
      %v565 = vld [vmem:[%s490 + $0x30] sm:$0xff]
      %v566 = vld [vmem:[%s490 + $0x38] sm:$0xff]
      %v567 = vpack.c.bf16 %v560, %v559
      %v568 = vpack.c.bf16 %v562, %v561
      %v569 = vpack.c.bf16 %v564, %v563
      %v570 = vpack.c.bf16 %v566, %v565
      %v571 = vld [vmem:[%s496] sm:$0xf]
      %v572 = vld [vmem:[%s496 + $0x4] sm:$0xf]
      %v573 = vld [vmem:[%s496 + $0x8] sm:$0xf]
      %v574 = vld [vmem:[%s496 + $0xc] sm:$0xf]
      %v575 = vld [vmem:[%s496 + $0x10] sm:$0xf]
      %v576 = vld [vmem:[%s496 + $0x14] sm:$0xf]
      %v577 = vld [vmem:[%s496 + $0x18] sm:$0xf]
      %v578 = vld [vmem:[%s496 + $0x1c] sm:$0xf]
      %v579 = vld [vmem:[%s509] sm:$0x1]
      %v581 = vlaneseq
      %v582 = vshrl.u32 %v581, 7
      %v583 = vsub.s32 0, %v582
      %v584 = vrot.slane %v579, %v583
      %v594 = vunpack.c.l.b16 %v571
      %v595 = vunpack.c.l.b16 %v572
      %v596 = vunpack.c.l.b16 %v573
      %v597 = vunpack.c.l.b16 %v574
      %v598 = vunpack.c.l.b16 %v575
      %v599 = vunpack.c.l.b16 %v576
      %v600 = vunpack.c.l.b16 %v577
      %v601 = vunpack.c.l.b16 %v578
      %v602 = vpack.c.b16 %v595, %v594
      %v603 = vpack.c.b16 %v597, %v596
      %v604 = vpack.c.b16 %v599, %v598
      %v605 = vpack.c.b16 %v601, %v600
      %vm610 = vcmask 523264
      %v612 = vsel %vm610, %v567, 0
      %v615 = vsel %vm610, %v568, 0
      %v618 = vsel %vm610, %v569, 0
      %v621 = vsel %vm610, %v570, 0
      %623 = vmatprep.subr.bf16.mxu0 0
      %624 = vmatpush1.bf16.msra.mxu0 0
      %625 = vmatprep.subr.bf16.mxu0 0
      %626 = vmatpush1.bf16.msra.mxu0 0
      %627 = vmatprep.subr.bf16.mxu0 0
      %628 = vmatpush1.bf16.msra.mxu0 0
      %629 = vmatprep.subr.bf16.mxu0 0
      %630 = vmatpush1.bf16.msra.mxu0 0
      %631 = vmatprep.subr.bf16.mxu0 0
      %632 = vmatpush1.bf16.msra.mxu0 %v605
      %633 = vmatprep.subr.bf16.mxu0 0
      %634 = vmatpush1.bf16.msra.mxu0 %v604
      %635 = vmatprep.subr.bf16.mxu0 0
      %636 = vmatpush1.bf16.msra.mxu0 %v603
      %637 = vmatprep.subr.bf16.mxu0 0
      %638 = vmatpush1.bf16.msra.mxu0 %v602
      %639 = vmatprep.subr.bf16.mxu0 0
      %640 = vmatpush2.bf16.msra.mxu0 0
      %641 = vmatprep.subr.bf16.mxu0 0
      %642 = vmatpush2.bf16.msra.mxu0 0
      %643 = vmatprep.subr.bf16.mxu0 0
      %644 = vmatpush2.bf16.msra.mxu0 0
      %645 = vmatprep.subr.bf16.mxu0 0
      %646 = vmatpush2.bf16.msra.mxu0 0
      %647 = vmatprep.subr.bf16.mxu0 0
      %648 = vmatpush2.bf16.msra.mxu0 0
      %649 = vmatprep.subr.bf16.mxu0 0
      %650 = vmatpush2.bf16.msra.mxu0 0
      %651 = vmatprep.subr.bf16.mxu0 0
      %652 = vmatpush2.bf16.msra.mxu0 0
      %653 = vmatprep.subr.bf16.mxu0 0
      %654 = vmatpush2.bf16.msra.mxu0 0
      %655 = vmatprep.mubr.bf16.mxu0 0
      %656 = vmatmul.mubr.bf16.gmra.mxu0 %v612
      %v657 = vpop.f32.mrf.mxu0
      %v658 = vadd.f32 %v584, %v657
      %v659 = vpop.f32.mrf.mxu0
      %v660 = vpop.f32.mrf.mxu0
      %v661 = vadd.f32 %v584, %v660
      %v662 = vpop.f32.mrf.mxu0
      %663 = vmatprep.mubr.bf16.mxu0 0
      %664 = vmatmul.mubr.bf16.gmra.mxu0 %v615
      %v665 = vpop.f32.mrf.mxu0
      %v666 = vadd.f32 %v584, %v665
      %v667 = vpop.f32.mrf.mxu0
      %v668 = vpop.f32.mrf.mxu0
      %v669 = vadd.f32 %v584, %v668
      %v670 = vpop.f32.mrf.mxu0
      %671 = vmatprep.mubr.bf16.mxu0 0
      %672 = vmatmul.mubr.bf16.gmra.mxu0 %v618
      %v673 = vpop.f32.mrf.mxu0
      %v674 = vadd.f32 %v584, %v673
      %v675 = vpop.f32.mrf.mxu0
      %v676 = vpop.f32.mrf.mxu0
      %v677 = vadd.f32 %v584, %v676
      %v678 = vpop.f32.mrf.mxu0
      %679 = vmatprep.mubr.bf16.mxu0 0
      %680 = vmatmul.mubr.bf16.gmra.mxu0 %v621
      %v681 = vpop.f32.mrf.mxu0
      %v682 = vadd.f32 %v584, %v681
      %v683 = vpop.f32.mrf.mxu0
      %v684 = vpop.f32.mrf.mxu0
      %v685 = vadd.f32 %v584, %v684
      %v686 = vpop.f32.mrf.mxu0
      %687 = vdwg.mxu0
      %v688 = vpack.c.bf16 %v661, %v658
      %v689 = vpack.c.bf16 %v669, %v666
      %v690 = vpack.c.bf16 %v677, %v674
      %v691 = vpack.c.bf16 %v685, %v682
      %v696 = vunpack.c.l.b16 %v688
      %v697 = vunpack.c.h.b16 %v688
      %v698 = vunpack.c.l.b16 %v689
      %v699 = vunpack.c.h.b16 %v689
      %v700 = vunpack.c.l.b16 %v690
      %v701 = vunpack.c.h.b16 %v690
      %v702 = vunpack.c.l.b16 %v691
      %v703 = vunpack.c.h.b16 %v691
      %v704 = vpack.c.b16 %v696, %v696
      %v705 = vpack.c.b16 %v697, %v697
      %v706 = vpack.c.b16 %v698, %v698
      %v707 = vpack.c.b16 %v699, %v699
      %v708 = vpack.c.b16 %v700, %v700
      %v709 = vpack.c.b16 %v701, %v701
      %v710 = vpack.c.b16 %v702, %v702
      %v711 = vpack.c.b16 %v703, %v703
      %vm720 = vcmask 125952
      %721 = vst.msk [vmem:[%s528] sm:$0xf] %vm720, %v704
      %722 = vst.msk [vmem:[%s528 + $0x4] sm:$0xf] %vm720, %v705
      %723 = vst.msk [vmem:[%s528 + $0x8] sm:$0xf] %vm720, %v706
      %724 = vst.msk [vmem:[%s528 + $0xc] sm:$0xf] %vm720, %v707
      %725 = vst.msk [vmem:[%s528 + $0x10] sm:$0xf] %vm720, %v708
      %726 = vst.msk [vmem:[%s528 + $0x14] sm:$0xf] %vm720, %v709
      %727 = vst.msk [vmem:[%s528 + $0x18] sm:$0xf] %vm720, %v710
      %728 = vst.msk [vmem:[%s528 + $0x1c] sm:$0xf] %vm720, %v711
      %v729 = vld [vmem:[%s501] sm:$0xf]
      %v730 = vld [vmem:[%s501 + $0x4] sm:$0xf]
      %v731 = vld [vmem:[%s501 + $0x8] sm:$0xf]
      %v732 = vld [vmem:[%s501 + $0xc] sm:$0xf]
      %v733 = vld [vmem:[%s501 + $0x10] sm:$0xf]
      %v734 = vld [vmem:[%s501 + $0x14] sm:$0xf]
      %v735 = vld [vmem:[%s501 + $0x18] sm:$0xf]
      %v736 = vld [vmem:[%s501 + $0x1c] sm:$0xf]
      %v737 = vld [vmem:[%s512] sm:$0x1]
      %v739 = vlaneseq
      %v740 = vshrl.u32 %v739, 7
      %v741 = vsub.s32 0, %v740
      %v742 = vrot.slane %v737, %v741
      %v752 = vunpack.c.l.b16 %v729
      %v753 = vunpack.c.l.b16 %v730
      %v754 = vunpack.c.l.b16 %v731
      %v755 = vunpack.c.l.b16 %v732
      %v756 = vunpack.c.l.b16 %v733
      %v757 = vunpack.c.l.b16 %v734
      %v758 = vunpack.c.l.b16 %v735
      %v759 = vunpack.c.l.b16 %v736
      %v760 = vpack.c.b16 %v753, %v752
      %v761 = vpack.c.b16 %v755, %v754
      %v762 = vpack.c.b16 %v757, %v756
      %v763 = vpack.c.b16 %v759, %v758
      %768 = vmatprep.subr.bf16.mxu0 0
      %769 = vmatpush1.bf16.msra.mxu0 0
      %770 = vmatprep.subr.bf16.mxu0 0
      %771 = vmatpush1.bf16.msra.mxu0 0
      %772 = vmatprep.subr.bf16.mxu0 0
      %773 = vmatpush1.bf16.msra.mxu0 0
      %774 = vmatprep.subr.bf16.mxu0 0
      %775 = vmatpush1.bf16.msra.mxu0 0
      %776 = vmatprep.subr.bf16.mxu0 0
      %777 = vmatpush1.bf16.msra.mxu0 %v763
      %778 = vmatprep.subr.bf16.mxu0 0
      %779 = vmatpush1.bf16.msra.mxu0 %v762
      %780 = vmatprep.subr.bf16.mxu0 0
      %781 = vmatpush1.bf16.msra.mxu0 %v761
      %782 = vmatprep.subr.bf16.mxu0 0
      %783 = vmatpush1.bf16.msra.mxu0 %v760
      %784 = vmatprep.subr.bf16.mxu0 0
      %785 = vmatpush2.bf16.msra.mxu0 0
      %786 = vmatprep.subr.bf16.mxu0 0
      %787 = vmatpush2.bf16.msra.mxu0 0
      %788 = vmatprep.subr.bf16.mxu0 0
      %789 = vmatpush2.bf16.msra.mxu0 0
      %790 = vmatprep.subr.bf16.mxu0 0
      %791 = vmatpush2.bf16.msra.mxu0 0
      %792 = vmatprep.subr.bf16.mxu0 0
      %793 = vmatpush2.bf16.msra.mxu0 0
      %794 = vmatprep.subr.bf16.mxu0 0
      %795 = vmatpush2.bf16.msra.mxu0 0
      %796 = vmatprep.subr.bf16.mxu0 0
      %797 = vmatpush2.bf16.msra.mxu0 0
      %798 = vmatprep.subr.bf16.mxu0 0
      %799 = vmatpush2.bf16.msra.mxu0 0
      %800 = vmatprep.mubr.bf16.mxu0 0
      %801 = vmatmul.mubr.bf16.gmra.mxu0 %v612
      %v802 = vpop.f32.mrf.mxu0
      %v803 = vadd.f32 %v742, %v802
      %v804 = vpop.f32.mrf.mxu0
      %v805 = vpop.f32.mrf.mxu0
      %v806 = vadd.f32 %v742, %v805
      %v807 = vpop.f32.mrf.mxu0
      %808 = vmatprep.mubr.bf16.mxu0 0
      %809 = vmatmul.mubr.bf16.gmra.mxu0 %v615
      %v810 = vpop.f32.mrf.mxu0
      %v811 = vadd.f32 %v742, %v810
      %v812 = vpop.f32.mrf.mxu0
      %v813 = vpop.f32.mrf.mxu0
      %v814 = vadd.f32 %v742, %v813
      %v815 = vpop.f32.mrf.mxu0
      %816 = vmatprep.mubr.bf16.mxu0 0
      %817 = vmatmul.mubr.bf16.gmra.mxu0 %v618
      %v818 = vpop.f32.mrf.mxu0
      %v819 = vadd.f32 %v742, %v818
      %v820 = vpop.f32.mrf.mxu0
      %v821 = vpop.f32.mrf.mxu0
      %v822 = vadd.f32 %v742, %v821
      %v823 = vpop.f32.mrf.mxu0
      %824 = vmatprep.mubr.bf16.mxu0 0
      %825 = vmatmul.mubr.bf16.gmra.mxu0 %v621
      %v826 = vpop.f32.mrf.mxu0
      %v827 = vadd.f32 %v742, %v826
      %v828 = vpop.f32.mrf.mxu0
      %v829 = vpop.f32.mrf.mxu0
      %v830 = vadd.f32 %v742, %v829
      %v831 = vpop.f32.mrf.mxu0
      %832 = vdwg.mxu0
      %v833 = vpack.c.bf16 %v806, %v803
      %v834 = vpack.c.bf16 %v814, %v811
      %v835 = vpack.c.bf16 %v822, %v819
      %v836 = vpack.c.bf16 %v830, %v827
      %v841 = vunpack.c.l.b16 %v833
      %v842 = vunpack.c.h.b16 %v833
      %v843 = vunpack.c.l.b16 %v834
      %v844 = vunpack.c.h.b16 %v834
      %v845 = vunpack.c.l.b16 %v835
      %v846 = vunpack.c.h.b16 %v835
      %v847 = vunpack.c.l.b16 %v836
      %v848 = vunpack.c.h.b16 %v836
      %v849 = vpack.c.b16 %v841, %v841
      %v850 = vpack.c.b16 %v842, %v842
      %v851 = vpack.c.b16 %v843, %v843
      %v852 = vpack.c.b16 %v844, %v844
      %v853 = vpack.c.b16 %v845, %v845
      %v854 = vpack.c.b16 %v846, %v846
      %v855 = vpack.c.b16 %v847, %v847
      %v856 = vpack.c.b16 %v848, %v848
      %865 = vst.msk [vmem:[%s542] sm:$0xf] %vm720, %v849
      %866 = vst.msk [vmem:[%s542 + $0x4] sm:$0xf] %vm720, %v850
      %867 = vst.msk [vmem:[%s542 + $0x8] sm:$0xf] %vm720, %v851
      %868 = vst.msk [vmem:[%s542 + $0xc] sm:$0xf] %vm720, %v852
      %869 = vst.msk [vmem:[%s542 + $0x10] sm:$0xf] %vm720, %v853
      %870 = vst.msk [vmem:[%s542 + $0x14] sm:$0xf] %vm720, %v854
      %871 = vst.msk [vmem:[%s542 + $0x18] sm:$0xf] %vm720, %v855
      %872 = vst.msk [vmem:[%s542 + $0x1c] sm:$0xf] %vm720, %v856
      %v873 = vld [vmem:[%s506] sm:$0xf]
      %v874 = vld [vmem:[%s506 + $0x4] sm:$0xf]
      %v875 = vld [vmem:[%s506 + $0x8] sm:$0xf]
      %v876 = vld [vmem:[%s506 + $0xc] sm:$0xf]
      %v877 = vld [vmem:[%s506 + $0x10] sm:$0xf]
      %v878 = vld [vmem:[%s506 + $0x14] sm:$0xf]
      %v879 = vld [vmem:[%s506 + $0x18] sm:$0xf]
      %v880 = vld [vmem:[%s506 + $0x1c] sm:$0xf]
      %v881 = vld [vmem:[%s515] sm:$0x1]
      %v883 = vlaneseq
      %v884 = vshrl.u32 %v883, 7
      %v885 = vsub.s32 0, %v884
      %v886 = vrot.slane %v881, %v885
      %v896 = vunpack.c.l.b16 %v873
      %v897 = vunpack.c.l.b16 %v874
      %v898 = vunpack.c.l.b16 %v875
      %v899 = vunpack.c.l.b16 %v876
      %v900 = vunpack.c.l.b16 %v877
      %v901 = vunpack.c.l.b16 %v878
      %v902 = vunpack.c.l.b16 %v879
      %v903 = vunpack.c.l.b16 %v880
      %v904 = vpack.c.b16 %v897, %v896
      %v905 = vpack.c.b16 %v899, %v898
      %v906 = vpack.c.b16 %v901, %v900
      %v907 = vpack.c.b16 %v903, %v902
      %912 = vmatprep.subr.bf16.mxu0 0
      %913 = vmatpush1.bf16.msra.mxu0 0
      %914 = vmatprep.subr.bf16.mxu0 0
      %915 = vmatpush1.bf16.msra.mxu0 0
      %916 = vmatprep.subr.bf16.mxu0 0
      %917 = vmatpush1.bf16.msra.mxu0 0
      %918 = vmatprep.subr.bf16.mxu0 0
      %919 = vmatpush1.bf16.msra.mxu0 0
      %920 = vmatprep.subr.bf16.mxu0 0
      %921 = vmatpush1.bf16.msra.mxu0 %v907
      %922 = vmatprep.subr.bf16.mxu0 0
      %923 = vmatpush1.bf16.msra.mxu0 %v906
      %924 = vmatprep.subr.bf16.mxu0 0
      %925 = vmatpush1.bf16.msra.mxu0 %v905
      %926 = vmatprep.subr.bf16.mxu0 0
      %927 = vmatpush1.bf16.msra.mxu0 %v904
      %928 = vmatprep.subr.bf16.mxu0 0
      %929 = vmatpush2.bf16.msra.mxu0 0
      %930 = vmatprep.subr.bf16.mxu0 0
      %931 = vmatpush2.bf16.msra.mxu0 0
      %932 = vmatprep.subr.bf16.mxu0 0
      %933 = vmatpush2.bf16.msra.mxu0 0
      %934 = vmatprep.subr.bf16.mxu0 0
      %935 = vmatpush2.bf16.msra.mxu0 0
      %936 = vmatprep.subr.bf16.mxu0 0
      %937 = vmatpush2.bf16.msra.mxu0 0
      %938 = vmatprep.subr.bf16.mxu0 0
      %939 = vmatpush2.bf16.msra.mxu0 0
      %940 = vmatprep.subr.bf16.mxu0 0
      %941 = vmatpush2.bf16.msra.mxu0 0
      %942 = vmatprep.subr.bf16.mxu0 0
      %943 = vmatpush2.bf16.msra.mxu0 0
      %944 = vmatprep.mubr.bf16.mxu0 0
      %945 = vmatmul.mubr.bf16.gmra.mxu0 %v612
      %v946 = vpop.f32.mrf.mxu0
      %v947 = vadd.f32 %v886, %v946
      %v948 = vpop.f32.mrf.mxu0
      %v949 = vpop.f32.mrf.mxu0
      %v950 = vadd.f32 %v886, %v949
      %v951 = vpop.f32.mrf.mxu0
      %952 = vmatprep.mubr.bf16.mxu0 0
      %953 = vmatmul.mubr.bf16.gmra.mxu0 %v615
      %v954 = vpop.f32.mrf.mxu0
      %v955 = vadd.f32 %v886, %v954
      %v956 = vpop.f32.mrf.mxu0
      %v957 = vpop.f32.mrf.mxu0
      %v958 = vadd.f32 %v886, %v957
      %v959 = vpop.f32.mrf.mxu0
      %960 = vmatprep.mubr.bf16.mxu0 0
      %961 = vmatmul.mubr.bf16.gmra.mxu0 %v618
      %v962 = vpop.f32.mrf.mxu0
      %v963 = vadd.f32 %v886, %v962
      %v964 = vpop.f32.mrf.mxu0
      %v965 = vpop.f32.mrf.mxu0
      %v966 = vadd.f32 %v886, %v965
      %v967 = vpop.f32.mrf.mxu0
      %968 = vmatprep.mubr.bf16.mxu0 0
      %969 = vmatmul.mubr.bf16.gmra.mxu0 %v621
      %v970 = vpop.f32.mrf.mxu0
      %v971 = vadd.f32 %v886, %v970
      %v972 = vpop.f32.mrf.mxu0
      %v973 = vpop.f32.mrf.mxu0
      %v974 = vadd.f32 %v886, %v973
      %v975 = vpop.f32.mrf.mxu0
      %976 = vdwg.mxu0
      %v977 = vpack.c.bf16 %v950, %v947
      %v978 = vpack.c.bf16 %v958, %v955
      %v979 = vpack.c.bf16 %v966, %v963
      %v980 = vpack.c.bf16 %v974, %v971
      %v985 = vunpack.c.l.b16 %v977
      %v986 = vunpack.c.h.b16 %v977
      %v987 = vunpack.c.l.b16 %v978
      %v988 = vunpack.c.h.b16 %v978
      %v989 = vunpack.c.l.b16 %v979
      %v990 = vunpack.c.h.b16 %v979
      %v991 = vunpack.c.l.b16 %v980
      %v992 = vunpack.c.h.b16 %v980
      %v993 = vpack.c.b16 %v985, %v985
      %v994 = vpack.c.b16 %v986, %v986
      %v995 = vpack.c.b16 %v987, %v987
      %v996 = vpack.c.b16 %v988, %v988
      %v997 = vpack.c.b16 %v989, %v989
      %v998 = vpack.c.b16 %v990, %v990
      %v999 = vpack.c.b16 %v991, %v991
      %v1000 = vpack.c.b16 %v992, %v992
      %1009 = vst.msk [vmem:[%s556] sm:$0xf] %vm720, %v993
      %1010 = vst.msk [vmem:[%s556 + $0x4] sm:$0xf] %vm720, %v994
      %1011 = vst.msk [vmem:[%s556 + $0x8] sm:$0xf] %vm720, %v995
      %1012 = vst.msk [vmem:[%s556 + $0xc] sm:$0xf] %vm720, %v996
      %1013 = vst.msk [vmem:[%s556 + $0x10] sm:$0xf] %vm720, %v997
      %1014 = vst.msk [vmem:[%s556 + $0x14] sm:$0xf] %vm720, %v998
      %1015 = vst.msk [vmem:[%s556 + $0x18] sm:$0xf] %vm720, %v999
      %1016 = vst.msk [vmem:[%s556 + $0x1c] sm:$0xf] %vm720, %v1000
      %s1017 = smul.u32 8, %s27
      %p1018 = scmp.lt.s32.totalorder %s26, 1
      %s1019 = scalar_select %p1018, %s26, 1
      %p1020 = scmp.lt.s32.totalorder %s28, 3
      %s1021 = scalar_select %p1020, %s28, 3
      %p1022 = scmp.lt.s32.totalorder %s1017, 15
      %s1023 = scalar_select %p1022, %s1017, 15
      %s1024 = smul.addr %s1021, 16
      %s1025 = sadd.s32 %s1023, %s1024
      %s1026 = smul.addr %s1019, 64
      %s1027 = sadd.s32 %s1025, %s1026
      %s1028 = smul.addr %s1027, 4
      %s1029 = scalar_lea.vmem %s7, %s1028
      %s1030 = smul.u32 8, %s27
      %p1031 = scmp.lt.s32.totalorder %s26, 1
      %s1032 = scalar_select %p1031, %s26, 1
      %p1033 = scmp.lt.s32.totalorder %s28, 3
      %s1034 = scalar_select %p1033, %s28, 3
      %p1035 = scmp.lt.s32.totalorder %s1030, 15
      %s1036 = scalar_select %p1035, %s1030, 15
      %s1037 = smul.addr %s1034, 16
      %s1038 = sadd.s32 %s1036, %s1037
      %s1039 = smul.addr %s1032, 64
      %s1040 = sadd.s32 %s1038, %s1039
      %s1041 = smul.addr %s1040, 4
      %s1042 = scalar_lea.vmem %s8, %s1041
      %s1043 = smul.u32 8, %s27
      %p1044 = scmp.lt.s32.totalorder %s26, 1
      %s1045 = scalar_select %p1044, %s26, 1
      %p1046 = scmp.lt.s32.totalorder %s28, 3
      %s1047 = scalar_select %p1046, %s28, 3
      %p1048 = scmp.lt.s32.totalorder %s1043, 15
      %s1049 = scalar_select %p1048, %s1043, 15
      %s1050 = smul.addr %s1047, 16
      %s1051 = sadd.s32 %s1049, %s1050
      %s1052 = smul.addr %s1045, 64
      %s1053 = sadd.s32 %s1051, %s1052
      %s1054 = smul.addr %s1053, 4
      %s1055 = scalar_lea.vmem %s9, %s1054
      // Predicated region
      $region49: #{tpu_custom_call.1} parent=47 // pred_check
        %p1056 = pneg %p246
      $region50: #{tpu_custom_call.1} parent=47 // pred_check_branch
        %1058 = sbr.rel (%p1056) target = $region52
      $region51: #{tpu_custom_call.1} parent=47 // pred_region
        %s1059 = smul.u32 8, %s27
      $region52: #{tpu_custom_call.1} parent=47 // pred_fallthru
        _
      // Predicated region
      $region53: #{tpu_custom_call.1} parent=47 // pred_check
        %p1060 = pneg %p276
      $region54: #{tpu_custom_call.1} parent=47 // pred_check_branch
        %1062 = sbr.rel (%p1060) target = $region56
      $region55: #{tpu_custom_call.1} parent=47 // pred_region
        %s1063 = smul.u32 8, %s27
      $region56: #{tpu_custom_call.1} parent=47 // pred_fallthru
        _
      // Predicated region
      $region57: #{tpu_custom_call.1} parent=47 // pred_check
        %p1064 = pneg %p306
      $region58: #{tpu_custom_call.1} parent=47 // pred_check_branch
        %1066 = sbr.rel (%p1064) target = $region60
      $region59: #{tpu_custom_call.1} parent=47 // pred_region
        %s1067 = smul.u32 8, %s27
      $region60: #{tpu_custom_call.1} parent=47 // pred_fallthru
        _
    $region48: #{tpu_custom_call.1} parent=5 // pred_fallthru
      _
    %p1068 = scmp.le.s32.totalorder 2, %s16
    // Predicated region
    $region61: #{tpu_custom_call.1} parent=5 // pred_check
      %p1069 = pneg %p1068
    $region62: #{tpu_custom_call.1} parent=5 // pred_check_branch
      %1071 = sbr.rel (%p1069) target = $region64
    $region63: #{tpu_custom_call.1} parent=5 // pred_region
      %s1072 = ssub.s32 %s16, 2
      // Predicated region
      $region65: #{tpu_custom_call.1} parent=63 // pred_check
        %p1073 = pneg %p252
      $region66: #{tpu_custom_call.1} parent=63 // pred_check_branch
        %1075 = sbr.rel (%p1073) target = $region68
      $region67: #{tpu_custom_call.1} parent=63 // pred_region
        %s1076 = smul.u32 8, %s30
        %p1077 = scmp.lt.s32.totalorder %s29, 1
        %s1078 = scalar_select %p1077, %s29, 1
        %p1079 = scmp.lt.s32.totalorder %s31, 3
        %s1080 = scalar_select %p1079, %s31, 3
        %p1081 = scmp.lt.s32.totalorder %s1076, 15
        %s1082 = scalar_select %p1081, %s1076, 15
        %s1083 = smul.addr %s1080, 16
        %s1084 = sadd.s32 %s1082, %s1083
        %s1085 = smul.addr %s1078, 64
        %s1086 = sadd.s32 %s1084, %s1085
        %s1087 = smul.addr %s1086, 4
        %s1088 = scalar_lea.vmem %s7, %s1087
      $region68: #{tpu_custom_call.1} parent=63 // pred_fallthru
        _
      // Predicated region
      $region69: #{tpu_custom_call.1} parent=63 // pred_check
        %p1089 = pneg %p282
      $region70: #{tpu_custom_call.1} parent=63 // pred_check_branch
        %1091 = sbr.rel (%p1089) target = $region72
      $region71: #{tpu_custom_call.1} parent=63 // pred_region
        %s1092 = smul.u32 8, %s30
        %p1093 = scmp.lt.s32.totalorder %s29, 1
        %s1094 = scalar_select %p1093, %s29, 1
        %p1095 = scmp.lt.s32.totalorder %s31, 3
        %s1096 = scalar_select %p1095, %s31, 3
        %p1097 = scmp.lt.s32.totalorder %s1092, 15
        %s1098 = scalar_select %p1097, %s1092, 15
        %s1099 = smul.addr %s1096, 16
        %s1100 = sadd.s32 %s1098, %s1099
        %s1101 = smul.addr %s1094, 64
        %s1102 = sadd.s32 %s1100, %s1101
        %s1103 = smul.addr %s1102, 4
        %s1104 = scalar_lea.vmem %s8, %s1103
      $region72: #{tpu_custom_call.1} parent=63 // pred_fallthru
        _
      // Predicated region
      $region73: #{tpu_custom_call.1} parent=63 // pred_check
        %p1105 = pneg %p312
      $region74: #{tpu_custom_call.1} parent=63 // pred_check_branch
        %1107 = sbr.rel (%p1105) target = $region76
      $region75: #{tpu_custom_call.1} parent=63 // pred_region
        %s1108 = smul.u32 8, %s30
        %p1109 = scmp.lt.s32.totalorder %s29, 1
        %s1110 = scalar_select %p1109, %s29, 1
        %p1111 = scmp.lt.s32.totalorder %s31, 3
        %s1112 = scalar_select %p1111, %s31, 3
        %p1113 = scmp.lt.s32.totalorder %s1108, 15
        %s1114 = scalar_select %p1113, %s1108, 15
        %s1115 = smul.addr %s1112, 16
        %s1116 = sadd.s32 %s1114, %s1115
        %s1117 = smul.addr %s1110, 64
        %s1118 = sadd.s32 %s1116, %s1117
        %s1119 = smul.addr %s1118, 4
        %s1120 = scalar_lea.vmem %s9, %s1119
      $region76: #{tpu_custom_call.1} parent=63 // pred_fallthru
        _
    $region64: #{tpu_custom_call.1} parent=5 // pred_fallthru
      _
  $region6: #{tpu_custom_call.1} parent=0 // loop_footer
    %s20 = sadd.s32 1, %s16
  $region7: #{tpu_custom_call.1} parent=0 // loop_footer_branch
    %15 = sbr.rel target = $region3
  $region8: #{tpu_custom_call.1} parent=0 // loop_exit
    _

</llo_original>
